<compile_context>
chip_gen: v7x
topology: tpu7x:2x2x1
jax: 0.10.0
libtpu: 0.0.40
codegen_flags: <defaults>
</compile_context>

<pallas_src>
import jax
import jax.numpy as jnp
import numpy as np
from jax.experimental import pallas as pl
from jax.experimental.pallas import tpu as pltpu


def _round_up(x, m):
    return ((x + m - 1) // m) * m


def _pick_tile(dim, requested, align):
    """Tile size (multiple of `align`) that keeps last-tile padding waste small."""
    dim_al = _round_up(dim, align)
    if dim_al <= requested:
        return dim_al                      # whole (aligned) dim fits in one tile
    requested = _round_up(requested, align)
    candidates = [requested,
                  max(align, _round_up(requested // 2, align)),
                  max(align, _round_up(requested // 4, align))]
    best = candidates[0]
    best_waste = _round_up(dim, best) - dim_al
    for c in candidates:                   # largest-first
        waste = _round_up(dim, c) - dim_al
        if waste * 8 <= dim_al:            # <= 12.5% extra padded output writes
            return c
        if waste < best_waste:
            best, best_waste = c, waste
    return best


def _vmem_limit_bytes(working_bytes, headroom=8 * 1024 * 1024):
    """Working set + fixed headroom, clamped to this generation's physical VMEM."""
    try:
        cap = int(pltpu.get_tpu_info().vmem_capacity_bytes)
    except Exception:
        cap = 64 * 1024 * 1024             # v7x per-TC VMEM (smallest generation)
    return int(max(16 * 1024 * 1024, min(working_bytes + headroom, cap)))


# ---------------------------------------------------------------------------
# Kernel 1: per-pair score  probs[b] = sigmoid( sum_f u[b,f] * i[b,f] )
# ---------------------------------------------------------------------------
def _forward_kernel(u_ref, i_ref, o_ref):
    prod = u_ref[...] * i_ref[...]                    # (bt, F)  VPU elementwise
    s = jnp.sum(prod, axis=1, keepdims=True)          # (bt, 1)  lane reduce (XLU)
    o_ref[...] = jax.nn.sigmoid(s)                    # EUP; output bytes are tiny


def recon_forward(user_emb, item_emb, users, items, *, bt=4096):
    """Equivalent of BayesianReCon.forward(users, items)."""
    B = users.shape[0]
    F = user_emb.shape[1]

    # Gather rows; keep natural (B, F) layout — no host-side transpose pass.
    u = jnp.take(user_emb, users, axis=0).astype(jnp.float32)   # (B, F)
    i = jnp.take(item_emb, items, axis=0).astype(jnp.float32)   # (B, F)

    bt = min(bt, _round_up(B, 8))
    Bp = _round_up(B, bt)
    u = jnp.pad(u, ((0, Bp - B), (0, 0)))
    i = jnp.pad(i, ((0, Bp - B), (0, 0)))

    probs = pl.pallas_call(
        _forward_kernel,
        out_shape=jax.ShapeDtypeStruct((Bp, 1), jnp.float32),
        grid_spec=pltpu.PrefetchScalarGridSpec(
            num_scalar_prefetch=0,
            grid=(Bp // bt,),
            in_specs=[
                pl.BlockSpec((bt, F), lambda b: (b, 0)),
                pl.BlockSpec((bt, F), lambda b: (b, 0)),
            ],
            out_specs=pl.BlockSpec((bt, 1), lambda b: (b, 0)),
        ),
        compiler_params=pltpu.CompilerParams(dimension_semantics=("parallel",)),
    )(u, i)
    return probs[:B, 0]


# ---------------------------------------------------------------------------
# Kernel 2: all user-item scores  sigmoid(U @ I^T)   (get_all_scores)
# ---------------------------------------------------------------------------
def _all_scores_kernel(u_ref, it_ref, o_ref):
    # u_ref: (tm, F), it_ref: (F, tn) — canonical MXU layout, f32 accumulation.
    s = jnp.dot(u_ref[...], it_ref[...], preferred_element_type=jnp.float32)
    # sigmoid(x) == 0.5 * tanh(0.5 * x) + 0.5 : single transcendental on the EUP.
    o_ref[...] = (0.5 * jnp.tanh(0.5 * s) + 0.5).astype(o_ref.dtype)


def recon_all_scores(user_emb, item_emb, *, tm=512, tn=2048,
                     compute_dtype=jnp.bfloat16, out_dtype=jnp.bfloat16):
    """Equivalent of BayesianReCon.get_all_scores() (bf16 in/out by default)."""
    M, F = user_emb.shape
    N = item_emb.shape[0]

    tm = _pick_tile(M, tm, 8)
    tn = _pick_tile(N, tn, 128)
    Mp = _round_up(M, tm)
    Np = _round_up(N, tn)

    u = jnp.pad(user_emb.astype(compute_dtype), ((0, Mp - M), (0, 0)))       # (Mp, F)
    # One-time O(N*F) host transpose (negligible vs the M*N output) so every
    # re-fetched item tile is already in MXU-friendly (F, tn) layout.
    it_t = jnp.pad(item_emb.astype(compute_dtype).T, ((0, 0), (0, Np - N)))  # (F, Np)

    in_b = jnp.dtype(compute_dtype).itemsize
    out_b = jnp.dtype(out_dtype).itemsize
    # Double-buffered working set (2 input tiles + 1 output tile, x2 buffers).
    working = 2 * (tm * F + tn * F) * in_b + 2 * tm * tn * out_b
    vmem_limit = _vmem_limit_bytes(working)

    probs = pl.pallas_call(
        _all_scores_kernel,
        out_shape=jax.ShapeDtypeStruct((Mp, Np), out_dtype),
        grid_spec=pltpu.PrefetchScalarGridSpec(
            num_scalar_prefetch=0,
            grid=(Mp // tm, Np // tn),
            in_specs=[
                pl.BlockSpec((tm, F), lambda i, j: (i, 0)),
                pl.BlockSpec((F, tn), lambda i, j: (0, j)),
            ],
            out_specs=pl.BlockSpec((tm, tn), lambda i, j: (i, j)),
        ),
        compiler_params=pltpu.CompilerParams(
            dimension_semantics=("parallel", "parallel"),
            vmem_limit_bytes=vmem_limit,
        ),
    )(u, it_t)
    return probs[:M, :N]


# TODO(synk): compute_ot_loss (host-side numpy Sinkhorn solver) and train_model
# (torch training loop) are training-only machinery, not part of the forward
# pass, and are not ported.


if __name__ == "__main__":
    # Deterministic synthetic parameters (matches nn.Embedding init with std=0.01).
    n_users, n_items, n_factors = 12, 20, 40
    batch = 8
    key = jax.random.PRNGKey(0)
    k_u, k_i, k_us, k_is = jax.random.split(key, 4)
    user_emb = 0.01 * jax.random.normal(k_u, (n_users, n_factors), dtype=jnp.float32)
    item_emb = 0.01 * jax.random.normal(k_i, (n_items, n_factors), dtype=jnp.float32)
    users = jax.random.randint(k_us, (batch,), 0, n_users, dtype=jnp.int32)
    items = jax.random.randint(k_is, (batch,), 0, n_items, dtype=jnp.int32)

    # --- forward() ---
    probs = jax.block_until_ready(recon_forward(user_emb, item_emb, users, items))
    ref_probs = jax.nn.sigmoid(jnp.sum(user_emb[users] * item_emb[items], axis=1))
    np.testing.assert_allclose(np.asarray(probs), np.asarray(ref_probs),
                               rtol=1e-6, atol=1e-6)

    # --- get_all_scores(), exact f32 path ---
    ref_all = jax.nn.sigmoid(user_emb @ item_emb.T)
    all_f32 = jax.block_until_ready(
        recon_all_scores(user_emb, item_emb,
                         compute_dtype=jnp.float32, out_dtype=jnp.float32))
    np.testing.assert_allclose(np.asarray(all_f32), np.asarray(ref_all),
                               rtol=1e-5, atol=1e-6)

    # --- get_all_scores(), default fast path (bf16 in/out, f32 accumulate) ---
    all_bf16 = jax.block_until_ready(recon_all_scores(user_emb, item_emb))
    np.testing.assert_allclose(np.asarray(all_bf16.astype(jnp.float32)),
                               np.asarray(ref_all), rtol=2e-2, atol=1e-2)

    print("KERNEL_OK")
</pallas_src>

<mosaic_0001>
module attributes {stable_mosaic.version = 11 : i64} {
  func.func @_forward_kernel(%arg0: i32, %arg1: memref<8x40xf32, #tpu.memory_space<vmem>>, %arg2: memref<8x40xf32, #tpu.memory_space<vmem>>, %arg3: memref<8x1xf32, #tpu.memory_space<vmem>>) attributes {dimension_semantics = [#tpu.dimension_semantics<parallel>], iteration_bounds = array<i64: 1>, scalar_prefetch = 0 : i64, scratch_operands = 0 : i64, tpu.core_type = #tpu.core_type<tc>, window_params = [{transform_indices = @transform_0, window_bounds = array<i64: 8, 40>}, {transform_indices = @transform_1, window_bounds = array<i64: 8, 40>}, {transform_indices = @transform_2, window_bounds = array<i64: 8, 1>}]} {
    %c0 = arith.constant 0 : index
    %c0_0 = arith.constant 0 : index
    %0 = vector.load %arg1[%c0, %c0_0] : memref<8x40xf32, #tpu.memory_space<vmem>>, vector<8x40xf32>
    %c0_1 = arith.constant 0 : index
    %c0_2 = arith.constant 0 : index
    %1 = vector.load %arg2[%c0_1, %c0_2] : memref<8x40xf32, #tpu.memory_space<vmem>>, vector<8x40xf32>
    %2 = arith.mulf %0, %1 : vector<8x40xf32>
    %cst = arith.constant dense<0.000000e+00> : vector<8xf32>
    %3 = vector.multi_reduction <add>, %2, %cst [1] : vector<8x40xf32> to vector<8xf32>
    %4 = vector.shape_cast %3 : vector<8xf32> to vector<8x1xf32>
    %5 = arith.negf %4 : vector<8x1xf32>
    %6 = math.exp %5 : vector<8x1xf32>
    %cst_3 = arith.constant 1.000000e+00 : f32
    %7 = vector.broadcast %cst_3 : f32 to vector<8x1xf32>
    %8 = arith.addf %7, %6 : vector<8x1xf32>
    %9 = arith.divf %7, %8 : vector<8x1xf32>
    %c0_4 = arith.constant 0 : index
    %c0_5 = arith.constant 0 : index
    %10 = vector.load %arg3[%c0_4, %c0_5] : memref<8x1xf32, #tpu.memory_space<vmem>>, vector<8x1xf32>
    tpu.vector_store %arg3[%c0_4, %c0_5], %9 {strides = array<i32>} : memref<8x1xf32, #tpu.memory_space<vmem>>, vector<8x1xf32>,
    return
  }
  func.func @transform_0(%arg0: i32) -> (i32, i32) {
    %c0_i32 = arith.constant 0 : i32
    %c0_i32_0 = arith.constant 0 : i32
    return %arg0, %c0_i32 : i32, i32
  }
  func.func @transform_1(%arg0: i32) -> (i32, i32) {
    %c0_i32 = arith.constant 0 : i32
    %c0_i32_0 = arith.constant 0 : i32
    return %arg0, %c0_i32 : i32, i32
  }
  func.func @transform_2(%arg0: i32) -> (i32, i32) {
    %c0_i32 = arith.constant 0 : i32
    %c0_i32_0 = arith.constant 0 : i32
    return %arg0, %c0_i32 : i32, i32
  }
}

</mosaic_0001>

<llo_original>
// kernel: tpu_custom_call.1
$region0: #{tpu_custom_call.1}
  #allocation0 [shape = 'u32[]', space=smem, size = 0x4, offset = 0x4, fixed_abs, tag = 'smem constant byte address 0x4 - core index']
  #allocation1 [shape = 'u32[144,128]{1,0:T(1,128)}', space=vmem, size = 0x12000, scoped, tag = 'internal scratch']
  %s0 = inlined_call_operand.hbm [shape: f32[8,40], index: 0, kind: input, shape index: {}]
  %s1 = inlined_call_operand.hbm [shape: f32[8,40], index: 1, kind: input, shape index: {}]
  %s2 = inlined_call_operand.vmem [shape: f32[8,1], index: 2, kind: output, shape index: {}]
  %s3 = sld [smem:[#allocation0]]
  $region26: #{tpu_custom_call.1} parent=0
    _
  %s5 = ssub.s32 1, %s3
  %s6 = scalar_select 0, %s5, %s3
  $region1: #{tpu_custom_call.1} parent=0
    #allocation2 [shape = 'u8[4096]{0}', space=vmem, size = 0x1000, scoped, tag = 'input window, operand 0, single buffered']
    #allocation3 [shape = 's32[1]{0}', space=sflag, size = 0x4, scoped, tag = 'scoped memory for tpu_custom_call.1']
    #allocation4 [shape = 'u8[4096]{0}', space=vmem, size = 0x1000, scoped, tag = 'input window, operand 1, single buffered']
    #allocation5 [shape = 's32[1]{0}', space=sflag, size = 0x4, scoped, tag = 'scoped memory for tpu_custom_call.1']
    %7 = vsyncpa [#allocation3], 0
    %8 = vsyncpa [#allocation5], 0
    // Predicated region
    $region2: #{tpu_custom_call.1} parent=1 // pred_check
      _
    $region3: #{tpu_custom_call.1} parent=1 // pred_check_branch
      %10 = sbr.rel (0) target = $region5
    $region4: #{tpu_custom_call.1} parent=1 // pred_region
      %s12 = ssub.s32 128, 128
      %13 = vsyncadd [#allocation3], %s12
      %s15 = sshll.u32 [#allocation2], 4
      %s16 = int_to_ptr.vmem [resolvable:$true] %s15
      %18 = dma.hbm_to_vmem [thread:$0]  %s0, 128, %s16, [#allocation3]
    $region5: #{tpu_custom_call.1} parent=1 // pred_fallthru
      _
    // Predicated region
    $region6: #{tpu_custom_call.1} parent=1 // pred_check
      _
    $region7: #{tpu_custom_call.1} parent=1 // pred_check_branch
      %20 = sbr.rel (0) target = $region9
    $region8: #{tpu_custom_call.1} parent=1 // pred_region
      %s22 = ssub.s32 128, 128
      %23 = vsyncadd [#allocation5], %s22
      %s25 = sshll.u32 [#allocation4], 4
      %s26 = int_to_ptr.vmem [resolvable:$true] %s25
      %28 = dma.hbm_to_vmem [thread:$0]  %s1, 128, %s26, [#allocation5]
    $region9: #{tpu_custom_call.1} parent=1 // pred_fallthru
      _
    // Predicated region
    $region10: #{tpu_custom_call.1} parent=1 // pred_check
      _
    $region11: #{tpu_custom_call.1} parent=1 // pred_check_branch
      %30 = sbr.rel (0) target = $region13
    $region12: #{tpu_custom_call.1} parent=1 // pred_region
      %31 = dma.done [#allocation3], 128
    $region13: #{tpu_custom_call.1} parent=1 // pred_fallthru
      _
    // Predicated region
    $region14: #{tpu_custom_call.1} parent=1 // pred_check
      _
    $region15: #{tpu_custom_call.1} parent=1 // pred_check_branch
      %33 = sbr.rel (0) target = $region17
    $region16: #{tpu_custom_call.1} parent=1 // pred_region
      %34 = dma.done [#allocation5], 128
    $region17: #{tpu_custom_call.1} parent=1 // pred_fallthru
      _
    %v35 = vld [vmem:[#allocation2] sm:$0xff]
    %v36 = vld [vmem:[#allocation4] sm:$0xff]
    %v37 = vmul.f32 %v35, %v36
    %vm38 = vcmask 326656
    %v39 = vsel %vm38, %v37, 0.0
    %40 = vadd.xlane.f32.xlu0 %v39
    %v41 = vpop.xlane.xlu0 %40
    %v42 = vxor.u32 %v41, 2147483648
    %v43 = vmul.f32 %v42, 1.442695
    %v44 = vpow.pop %v43
    %v45 = vadd.f32 %v44, 1.0
    %v46 = vrcp.pop %v45
    %v47 = vmul.f32 1.0, %v46
    %vm48 = vcmask 7168
    %49 = vst.msk [vmem:[%s2] sm:$0xff] %vm48, %v47
    // Predicated region
    $region18: #{tpu_custom_call.1} parent=1 // pred_check
      _
    $region19: #{tpu_custom_call.1} parent=1 // pred_check_branch
      %51 = sbr.rel (0) target = $region21
    $region20: #{tpu_custom_call.1} parent=1 // pred_region
      _
    $region21: #{tpu_custom_call.1} parent=1 // pred_fallthru
      _
    // Predicated region
    $region22: #{tpu_custom_call.1} parent=1 // pred_check
      _
    $region23: #{tpu_custom_call.1} parent=1 // pred_check_branch
      %53 = sbr.rel (0) target = $region25
    $region24: #{tpu_custom_call.1} parent=1 // pred_region
      _
    $region25: #{tpu_custom_call.1} parent=1 // pred_fallthru
      _
    %54 = vsyncpa [#allocation3], 1
    %55 = vsyncpa [#allocation5], 1

</llo_original>
